<compile_context>
chip_gen: v6e
topology: v6e:2x2x1
jax: 0.10.0
libtpu: 0.0.40
codegen_flags: <defaults>
</compile_context>

<pallas_src>
import functools

import jax
import jax.numpy as jnp
from jax import lax
from jax.experimental import pallas as pl
from jax.experimental.pallas import tpu as pltpu

LEAKY_SLOPE = 0.01   # nn.LeakyReLU default
BN_EPS = 1e-5        # nn.BatchNorm2d default


def fused_convrelu_kernel(x_ref, b1_ref, g1_ref, be1_ref, b2_ref, g2_ref,
                          be2_ref, o_ref, xpad_ref, ypad_ref, *, W, Cout):
    """Fused (Conv3x3 pad=1 -> BN(batch stats) -> LeakyReLU) x 2, lane-dense.

    x_ref:    (N, H, W*Cin)        folded NHWC input, f32
    b1_ref:   (3, W*Cin, W*Cout)   stage-1 banded weights (one per dh), f32
    g1_ref:   (1, W*Cout)          stage-1 BN gamma, lane-replicated per w
    be1_ref:  (1, W*Cout)          stage-1 BN beta,  lane-replicated per w
    b2_ref:   (3, W*Cout, W*Cout)  stage-2 banded weights, f32
    g2_ref:   (1, W*Cout)
    be2_ref:  (1, W*Cout)
    o_ref:    (N*H, W*Cout)        lane-dense folded output, f32
    xpad_ref: (N, H+2, W*Cin)      VMEM scratch: stage-1 rows + 1-row H-halo
    ypad_ref: (N, H+2, W*Cout)     VMEM scratch: stage-2 rows + 1-row H-halo
    """
    N, Hp2, WCi = xpad_ref.shape
    H = Hp2 - 2
    WCo = W * Cout
    R = N * H                        # folded output rows
    inv_cnt = 1.0 / float(R * W)     # BN averages over N*H*W samples

    def lane_group_reduce(v):
        # v: (1, W*C) per-lane column sums.  Butterfly of cyclic lane rolls
        # (shifts are multiples of C, so channels never mix); every lane ends
        # up holding its channel's total, already replicated across w, so no
        # lane<->sublane reshape and no jnp.tile is needed downstream.
        if W & (W - 1):  # non-power-of-two W: tiny reshape fallback
            tot = jnp.sum(v.reshape(W, Cout), axis=0, keepdims=True)
            return jnp.tile(tot, (1, W))
        shift = (W // 2) * Cout
        while shift >= Cout:
            v = v + pltpu.roll(v, shift, axis=1)
            shift //= 2
        return v

    def bn_leakyrelu(acc, gamma_f, beta_f):
        # Training-mode BatchNorm (biased batch variance) + LeakyReLU.
        # One pass over acc: sum and sum-of-squares accumulated together,
        # then a single per-lane FMA with the folded scale/shift.
        s = jnp.sum(acc, axis=0, keepdims=True)          # (1, W*Cout)
        s2 = jnp.sum(acc * acc, axis=0, keepdims=True)   # (1, W*Cout)
        mean = lane_group_reduce(s) * inv_cnt            # per-channel, replicated
        var = lane_group_reduce(s2) * inv_cnt - mean * mean
        scale = gamma_f * lax.rsqrt(var + BN_EPS)
        shift = beta_f - mean * scale
        y = acc * scale + shift
        return jnp.where(y > 0, y, LEAKY_SLOPE * y)

    def conv3x3_banded(src_pad_ref, band_ref, width):
        # Three row-strip matmuls.  The dw taps and the width zero-padding are
        # baked into the banded weights, so the accumulator is born in the
        # folded (R, W*Cout) layout: no im2col, no concatenate, no relayout.
        acc = jnp.dot(src_pad_ref[:, 0:H, :].reshape(R, width), band_ref[0],
                      preferred_element_type=jnp.float32)
        for dh in (1, 2):
            acc += jnp.dot(src_pad_ref[:, dh:dh + H, :].reshape(R, width),
                           band_ref[dh], preferred_element_type=jnp.float32)
        return acc

    # ---- stage 1 -----------------------------------------------------------
    # Zero only the two H-halo rows per image (interior is fully overwritten),
    # then drop the folded input into the interior with full-lane stores.
    xpad_ref[:, 0:1, :] = jnp.zeros((N, 1, WCi), xpad_ref.dtype)
    xpad_ref[:, H + 1:H + 2, :] = jnp.zeros((N, 1, WCi), xpad_ref.dtype)
    xpad_ref[:, 1:H + 1, :] = x_ref[...]

    acc1 = conv3x3_banded(xpad_ref, b1_ref, WCi)         # (R, W*Cout) f32
    y1 = bn_leakyrelu(acc1, g1_ref[...], be1_ref[...])

    # Stage-1 activation stays resident in VMEM, lane-dense, H-halo only.
    ypad_ref[:, 0:1, :] = jnp.zeros((N, 1, WCo), ypad_ref.dtype)
    ypad_ref[:, H + 1:H + 2, :] = jnp.zeros((N, 1, WCo), ypad_ref.dtype)
    ypad_ref[:, 1:H + 1, :] = y1.reshape(N, H, WCo)

    # ---- stage 2 -----------------------------------------------------------
    acc2 = conv3x3_banded(ypad_ref, b2_ref, WCo)          # (R, W*Cout) f32
    o_ref[...] = bn_leakyrelu(acc2, g2_ref[...], be2_ref[...]).astype(o_ref.dtype)


def build_banded_weights(w_hwio, W):
    """(3, 3, Cin, Cout) conv kernel -> (3, W*Cin, W*Cout) banded matmul weights.

    band[dh, sw*Cin + ci, w*Cout + co] = w_hwio[dh, sw - w + 1, ci, co]
    for |sw - w| <= 1, else 0.  The dw taps and the width zero-padding of the
    stride-1 'same' conv are folded into the weight matrix, so the conv becomes
    three matmuls on lane-dense row strips.  Tiny one-off prep in the wrapper.
    """
    KH, KW, Cin, Cout = w_hwio.shape
    sw = jnp.arange(W)[:, None]                     # source width position
    wo = jnp.arange(W)[None, :]                     # output width position
    dw = sw - wo + (KW // 2)                        # tap index
    valid = ((dw >= 0) & (dw < KW)).astype(w_hwio.dtype)
    dw = jnp.clip(dw, 0, KW - 1)
    blocks = w_hwio[:, dw] * valid[None, :, :, None, None]   # (KH, W, W, Cin, Cout)
    return blocks.transpose(0, 1, 3, 2, 4).reshape(KH, W * Cin, W * Cout)


def conv_relu_pallas(x_nhwc, params):
    """Runs the fused two-stage block. x_nhwc: (N, H, W, Cin) f32."""
    N, H, W, Cin = x_nhwc.shape
    Cout = params["g1"].shape[0]
    WCi, WCo = W * Cin, W * Cout

    # Lane-dense folded operands (tiny, parameter/layout prep only):
    x_f = x_nhwc.reshape(N, H, WCi)
    b1 = build_banded_weights(params["w1"], W)               # (3, W*Cin,  W*Cout)
    b2 = build_banded_weights(params["w2"], W)               # (3, W*Cout, W*Cout)
    g1 = jnp.tile(params["g1"].reshape(1, Cout), (1, W))     # (1, W*Cout)
    be1 = jnp.tile(params["be1"].reshape(1, Cout), (1, W))
    g2 = jnp.tile(params["g2"].reshape(1, Cout), (1, W))
    be2 = jnp.tile(params["be2"].reshape(1, Cout), (1, W))

    flops = (2 * 3 * N * H * WCi * WCo          # stage-1 banded matmuls
             + 2 * 3 * N * H * WCo * WCo        # stage-2 banded matmuls
             + 10 * N * H * WCo)                # BN + LeakyReLU epilogues
    bytes_accessed = 4 * (x_f.size + b1.size + b2.size + 4 * WCo + N * H * WCo)

    kernel = functools.partial(fused_convrelu_kernel, W=W, Cout=Cout)

    out_folded = pl.pallas_call(
        kernel,
        out_shape=jax.ShapeDtypeStruct((N * H, WCo), jnp.float32),
        grid=(1,),
        in_specs=[
            pl.BlockSpec((N, H, WCi), lambda i: (0, 0, 0)),      # x (folded)
            pl.BlockSpec((3, WCi, WCo), lambda i: (0, 0, 0)),    # banded w1
            pl.BlockSpec((1, WCo), lambda i: (0, 0)),            # gamma1 (folded)
            pl.BlockSpec((1, WCo), lambda i: (0, 0)),            # beta1
            pl.BlockSpec((3, WCo, WCo), lambda i: (0, 0, 0)),    # banded w2
            pl.BlockSpec((1, WCo), lambda i: (0, 0)),            # gamma2
            pl.BlockSpec((1, WCo), lambda i: (0, 0)),            # beta2
        ],
        out_specs=pl.BlockSpec((N * H, WCo), lambda i: (0, 0)),
        scratch_shapes=[
            pltpu.VMEM((N, H + 2, WCi), jnp.float32),   # stage-1 rows + halo
            pltpu.VMEM((N, H + 2, WCo), jnp.float32),   # stage-2 rows + halo
        ],
        compiler_params=pltpu.CompilerParams(
            dimension_semantics=("arbitrary",)),
        cost_estimate=pl.CostEstimate(
            flops=flops, transcendentals=2 * WCo,
            bytes_accessed=bytes_accessed),
    )(x_f, b1, g1, be1, b2, g2, be2)

    return out_folded.reshape(N, H, W, Cout)


def init_params(key, in_channels, out_channels):
    """Deterministic parameter init (shapes follow ConvRelu.__init__)."""
    k1, k2, k3, k4 = jax.random.split(key, 4)

    def conv_init(kw, kb, cin, cout):
        bound = 1.0 / jnp.sqrt(cin * 3.0 * 3.0)  # PyTorch kaiming-uniform bound
        w = jax.random.uniform(kw, (3, 3, cin, cout), jnp.float32, -bound, bound)
        b = jax.random.uniform(kb, (cout,), jnp.float32, -bound, bound)
        return w, b

    w1, b1 = conv_init(k1, k2, in_channels, out_channels)
    w2, b2 = conv_init(k3, k4, out_channels, out_channels)
    return {
        # Conv biases b1/b2 are kept for parity with the module's parameter
        # set, but under the following training-mode BatchNorm they are exact
        # no-ops (the mean subtraction cancels them), so the kernel skips them.
        "w1": w1, "b1": b1,
        "g1": jnp.ones((out_channels,), jnp.float32),    # BN weight default
        "be1": jnp.zeros((out_channels,), jnp.float32),  # BN bias default
        "w2": w2, "b2": b2,
        "g2": jnp.ones((out_channels,), jnp.float32),
        "be2": jnp.zeros((out_channels,), jnp.float32),
    }


@jax.jit
def conv_relu_forward(x_nchw, params):
    # NCHW (PyTorch) -> NHWC (TPU-friendly: width*channels on the lane axis)
    x = jnp.transpose(x_nchw, (0, 2, 3, 1)).astype(jnp.float32)
    y = conv_relu_pallas(x, params)          # single fused pallas_call
    return jnp.transpose(y, (0, 3, 1, 2))    # back to NCHW


if __name__ == "__main__":
    key = jax.random.PRNGKey(0)
    kx, kp = jax.random.split(key)

    in_channels, out_channels = 4, 8
    x = jax.random.normal(kx, (2, in_channels, 16, 16), jnp.float32)  # NCHW
    params = init_params(kp, in_channels, out_channels)

    out = conv_relu_forward(x, params)
    jax.block_until_ready(out)
    assert out.shape == (2, out_channels, 16, 16)
    print("KERNEL_OK")
</pallas_src>

<mosaic_0001>
module attributes {stable_mosaic.version = 11 : i64} {
  func.func @fused_convrelu_kernel(%arg0: i32, %arg1: memref<2x16x64xf32, #tpu.memory_space<vmem>>, %arg2: memref<3x64x128xf32, #tpu.memory_space<vmem>>, %arg3: memref<1x128xf32, #tpu.memory_space<vmem>>, %arg4: memref<1x128xf32, #tpu.memory_space<vmem>>, %arg5: memref<3x128x128xf32, #tpu.memory_space<vmem>>, %arg6: memref<1x128xf32, #tpu.memory_space<vmem>>, %arg7: memref<1x128xf32, #tpu.memory_space<vmem>>, %arg8: memref<32x128xf32, #tpu.memory_space<vmem>>, %arg9: memref<2x18x64xf32, #tpu.memory_space<vmem>>, %arg10: memref<2x18x128xf32, #tpu.memory_space<vmem>>) attributes {dimension_semantics = [#tpu.dimension_semantics<arbitrary>], iteration_bounds = array<i64: 1>, scalar_prefetch = 0 : i64, scratch_operands = 2 : i64, tpu.core_type = #tpu.core_type<tc>, window_params = [{pipeline_mode = #tpu.pipeline_mode<synchronous>, transform_indices = @transform_0, window_bounds = array<i64: 2, 16, 64>}, {pipeline_mode = #tpu.pipeline_mode<synchronous>, transform_indices = @transform_1, window_bounds = array<i64: 3, 64, 128>}, {pipeline_mode = #tpu.pipeline_mode<synchronous>, transform_indices = @transform_2, window_bounds = array<i64: 1, 128>}, {pipeline_mode = #tpu.pipeline_mode<synchronous>, transform_indices = @transform_3, window_bounds = array<i64: 1, 128>}, {pipeline_mode = #tpu.pipeline_mode<synchronous>, transform_indices = @transform_4, window_bounds = array<i64: 3, 128, 128>}, {pipeline_mode = #tpu.pipeline_mode<synchronous>, transform_indices = @transform_5, window_bounds = array<i64: 1, 128>}, {pipeline_mode = #tpu.pipeline_mode<synchronous>, transform_indices = @transform_6, window_bounds = array<i64: 1, 128>}, {pipeline_mode = #tpu.pipeline_mode<synchronous>, transform_indices = @transform_7, window_bounds = array<i64: 32, 128>}]} {
    %cst = arith.constant 0.000000e+00 : f32
    %0 = vector.broadcast %cst : f32 to vector<2x1x64xf32>
    %c0 = arith.constant 0 : index
    %c0_0 = arith.constant 0 : index
    %c0_1 = arith.constant 0 : index
    %1 = vector.load %arg9[%c0, %c0_0, %c0_1] : memref<2x18x64xf32, #tpu.memory_space<vmem>>, vector<2x1x64xf32>
    tpu.vector_store %arg9[%c0, %c0_0, %c0_1], %0 {strides = array<i32>} : memref<2x18x64xf32, #tpu.memory_space<vmem>>, vector<2x1x64xf32>,
    %cst_2 = arith.constant 0.000000e+00 : f32
    %2 = vector.broadcast %cst_2 : f32 to vector<2x1x64xf32>
    %c0_3 = arith.constant 0 : index
    %c17 = arith.constant 17 : index
    %c0_4 = arith.constant 0 : index
    %3 = vector.load %arg9[%c0_3, %c17, %c0_4] : memref<2x18x64xf32, #tpu.memory_space<vmem>>, vector<2x1x64xf32>
    tpu.vector_store %arg9[%c0_3, %c17, %c0_4], %2 {strides = array<i32>} : memref<2x18x64xf32, #tpu.memory_space<vmem>>, vector<2x1x64xf32>,
    %c0_5 = arith.constant 0 : index
    %c0_6 = arith.constant 0 : index
    %c0_7 = arith.constant 0 : index
    %4 = vector.load %arg1[%c0_5, %c0_6, %c0_7] : memref<2x16x64xf32, #tpu.memory_space<vmem>>, vector<2x16x64xf32>
    %c0_8 = arith.constant 0 : index
    %c1 = arith.constant 1 : index
    %c0_9 = arith.constant 0 : index
    %5 = vector.load %arg9[%c0_8, %c1, %c0_9] : memref<2x18x64xf32, #tpu.memory_space<vmem>>, vector<2x16x64xf32>
    tpu.vector_store %arg9[%c0_8, %c1, %c0_9], %4 {strides = array<i32>} : memref<2x18x64xf32, #tpu.memory_space<vmem>>, vector<2x16x64xf32>,
    %c0_10 = arith.constant 0 : index
    %c0_11 = arith.constant 0 : index
    %c0_12 = arith.constant 0 : index
    %6 = vector.load %arg9[%c0_10, %c0_11, %c0_12] : memref<2x18x64xf32, #tpu.memory_space<vmem>>, vector<2x16x64xf32>
    %7 = vector.shape_cast %6 : vector<2x16x64xf32> to vector<32x64xf32>
    %c0_13 = arith.constant 0 : index
    %c0_14 = arith.constant 0 : index
    %c0_15 = arith.constant 0 : index
    %8 = vector.load %arg2[%c0_13, %c0_14, %c0_15] : memref<3x64x128xf32, #tpu.memory_space<vmem>>, vector<1x64x128xf32>
    %9 = vector.shape_cast %8 : vector<1x64x128xf32> to vector<64x128xf32>
    %cst_16 = arith.constant dense<0.000000e+00> : vector<32x128xf32>
    %10 = tpu.matmul %7, %9, %cst_16 {dimension_numbers = #tpu.dot_dimension_numbers<[1], [0], [0], [1], [0, 0, 1, 1], [], []>} : vector<32x64xf32>, vector<64x128xf32>, vector<32x128xf32> -> vector<32x128xf32>
    %c0_17 = arith.constant 0 : index
    %c1_18 = arith.constant 1 : index
    %c0_19 = arith.constant 0 : index
    %11 = vector.load %arg9[%c0_17, %c1_18, %c0_19] : memref<2x18x64xf32, #tpu.memory_space<vmem>>, vector<2x16x64xf32>
    %12 = vector.shape_cast %11 : vector<2x16x64xf32> to vector<32x64xf32>
    %c1_20 = arith.constant 1 : index
    %c0_21 = arith.constant 0 : index
    %c0_22 = arith.constant 0 : index
    %13 = vector.load %arg2[%c1_20, %c0_21, %c0_22] : memref<3x64x128xf32, #tpu.memory_space<vmem>>, vector<1x64x128xf32>
    %14 = vector.shape_cast %13 : vector<1x64x128xf32> to vector<64x128xf32>
    %cst_23 = arith.constant dense<0.000000e+00> : vector<32x128xf32>
    %15 = tpu.matmul %12, %14, %cst_23 {dimension_numbers = #tpu.dot_dimension_numbers<[1], [0], [0], [1], [0, 0, 1, 1], [], []>} : vector<32x64xf32>, vector<64x128xf32>, vector<32x128xf32> -> vector<32x128xf32>
    %16 = arith.addf %10, %15 : vector<32x128xf32>
    %c0_24 = arith.constant 0 : index
    %c2 = arith.constant 2 : index
    %c0_25 = arith.constant 0 : index
    %17 = vector.load %arg9[%c0_24, %c2, %c0_25] : memref<2x18x64xf32, #tpu.memory_space<vmem>>, vector<2x16x64xf32>
    %18 = vector.shape_cast %17 : vector<2x16x64xf32> to vector<32x64xf32>
    %c2_26 = arith.constant 2 : index
    %c0_27 = arith.constant 0 : index
    %c0_28 = arith.constant 0 : index
    %19 = vector.load %arg2[%c2_26, %c0_27, %c0_28] : memref<3x64x128xf32, #tpu.memory_space<vmem>>, vector<1x64x128xf32>
    %20 = vector.shape_cast %19 : vector<1x64x128xf32> to vector<64x128xf32>
    %cst_29 = arith.constant dense<0.000000e+00> : vector<32x128xf32>
    %21 = tpu.matmul %18, %20, %cst_29 {dimension_numbers = #tpu.dot_dimension_numbers<[1], [0], [0], [1], [0, 0, 1, 1], [], []>} : vector<32x64xf32>, vector<64x128xf32>, vector<32x128xf32> -> vector<32x128xf32>
    %22 = arith.addf %16, %21 : vector<32x128xf32>
    %c0_30 = arith.constant 0 : index
    %c0_31 = arith.constant 0 : index
    %23 = vector.load %arg3[%c0_30, %c0_31] : memref<1x128xf32, #tpu.memory_space<vmem>>, vector<1x128xf32>
    %c0_32 = arith.constant 0 : index
    %c0_33 = arith.constant 0 : index
    %24 = vector.load %arg4[%c0_32, %c0_33] : memref<1x128xf32, #tpu.memory_space<vmem>>, vector<1x128xf32>
    %cst_34 = arith.constant dense<0.000000e+00> : vector<128xf32>
    %25 = vector.multi_reduction <add>, %22, %cst_34 [0] : vector<32x128xf32> to vector<128xf32>
    %26 = vector.shape_cast %25 : vector<128xf32> to vector<1x128xf32>
    %27 = arith.mulf %22, %22 : vector<32x128xf32>
    %cst_35 = arith.constant dense<0.000000e+00> : vector<128xf32>
    %28 = vector.multi_reduction <add>, %27, %cst_35 [0] : vector<32x128xf32> to vector<128xf32>
    %29 = vector.shape_cast %28 : vector<128xf32> to vector<1x128xf32>
    %c64_i32 = arith.constant 64 : i32
    %30 = tpu.dynamic_rotate %26 by %c64_i32 dim 1 : vector<1x128xf32>, i32 -> vector<1x128xf32>
    %31 = arith.addf %26, %30 : vector<1x128xf32>
    %c32_i32 = arith.constant 32 : i32
    %32 = tpu.dynamic_rotate %31 by %c32_i32 dim 1 : vector<1x128xf32>, i32 -> vector<1x128xf32>
    %33 = arith.addf %31, %32 : vector<1x128xf32>
    %c16_i32 = arith.constant 16 : i32
    %34 = tpu.dynamic_rotate %33 by %c16_i32 dim 1 : vector<1x128xf32>, i32 -> vector<1x128xf32>
    %35 = arith.addf %33, %34 : vector<1x128xf32>
    %c8_i32 = arith.constant 8 : i32
    %36 = tpu.dynamic_rotate %35 by %c8_i32 dim 1 : vector<1x128xf32>, i32 -> vector<1x128xf32>
    %37 = arith.addf %35, %36 : vector<1x128xf32>
    %cst_36 = arith.constant 0.001953125 : f32
    %38 = vector.broadcast %cst_36 : f32 to vector<1x128xf32>
    %39 = arith.mulf %37, %38 : vector<1x128xf32>
    %c64_i32_37 = arith.constant 64 : i32
    %40 = tpu.dynamic_rotate %29 by %c64_i32_37 dim 1 : vector<1x128xf32>, i32 -> vector<1x128xf32>
    %41 = arith.addf %29, %40 : vector<1x128xf32>
    %c32_i32_38 = arith.constant 32 : i32
    %42 = tpu.dynamic_rotate %41 by %c32_i32_38 dim 1 : vector<1x128xf32>, i32 -> vector<1x128xf32>
    %43 = arith.addf %41, %42 : vector<1x128xf32>
    %c16_i32_39 = arith.constant 16 : i32
    %44 = tpu.dynamic_rotate %43 by %c16_i32_39 dim 1 : vector<1x128xf32>, i32 -> vector<1x128xf32>
    %45 = arith.addf %43, %44 : vector<1x128xf32>
    %c8_i32_40 = arith.constant 8 : i32
    %46 = tpu.dynamic_rotate %45 by %c8_i32_40 dim 1 : vector<1x128xf32>, i32 -> vector<1x128xf32>
    %47 = arith.addf %45, %46 : vector<1x128xf32>
    %cst_41 = arith.constant 0.001953125 : f32
    %48 = vector.broadcast %cst_41 : f32 to vector<1x128xf32>
    %49 = arith.mulf %47, %48 : vector<1x128xf32>
    %50 = arith.mulf %39, %39 : vector<1x128xf32>
    %51 = arith.subf %49, %50 : vector<1x128xf32>
    %cst_42 = arith.constant 9.99999974E-6 : f32
    %52 = vector.broadcast %cst_42 : f32 to vector<1x128xf32>
    %53 = arith.addf %51, %52 : vector<1x128xf32>
    %54 = math.rsqrt %53 : vector<1x128xf32>
    %55 = arith.mulf %23, %54 : vector<1x128xf32>
    %56 = arith.mulf %39, %55 : vector<1x128xf32>
    %57 = arith.subf %24, %56 : vector<1x128xf32>
    %58 = vector.broadcast %55 : vector<1x128xf32> to vector<32x128xf32>
    %59 = arith.mulf %22, %58 : vector<32x128xf32>
    %60 = vector.broadcast %57 : vector<1x128xf32> to vector<32x128xf32>
    %61 = arith.addf %59, %60 : vector<32x128xf32>
    %cst_43 = arith.constant 0.000000e+00 : f32
    %62 = vector.broadcast %cst_43 : f32 to vector<32x128xf32>
    %63 = arith.cmpf ogt, %61, %62 : vector<32x128xf32>
    %cst_44 = arith.constant 0.00999999977 : f32
    %64 = vector.broadcast %cst_44 : f32 to vector<32x128xf32>
    %65 = arith.mulf %64, %61 : vector<32x128xf32>
    %66 = arith.select %63, %61, %65 : vector<32x128xi1>, vector<32x128xf32>
    %cst_45 = arith.constant 0.000000e+00 : f32
    %67 = vector.broadcast %cst_45 : f32 to vector<2x1x128xf32>
    %c0_46 = arith.constant 0 : index
    %c0_47 = arith.constant 0 : index
    %c0_48 = arith.constant 0 : index
    %68 = vector.load %arg10[%c0_46, %c0_47, %c0_48] : memref<2x18x128xf32, #tpu.memory_space<vmem>>, vector<2x1x128xf32>
    tpu.vector_store %arg10[%c0_46, %c0_47, %c0_48], %67 {strides = array<i32>} : memref<2x18x128xf32, #tpu.memory_space<vmem>>, vector<2x1x128xf32>,
    %cst_49 = arith.constant 0.000000e+00 : f32
    %69 = vector.broadcast %cst_49 : f32 to vector<2x1x128xf32>
    %c0_50 = arith.constant 0 : index
    %c17_51 = arith.constant 17 : index
    %c0_52 = arith.constant 0 : index
    %70 = vector.load %arg10[%c0_50, %c17_51, %c0_52] : memref<2x18x128xf32, #tpu.memory_space<vmem>>, vector<2x1x128xf32>
    tpu.vector_store %arg10[%c0_50, %c17_51, %c0_52], %69 {strides = array<i32>} : memref<2x18x128xf32, #tpu.memory_space<vmem>>, vector<2x1x128xf32>,
    %71 = vector.shape_cast %66 : vector<32x128xf32> to vector<2x16x128xf32>
    %c0_53 = arith.constant 0 : index
    %c1_54 = arith.constant 1 : index
    %c0_55 = arith.constant 0 : index
    %72 = vector.load %arg10[%c0_53, %c1_54, %c0_55] : memref<2x18x128xf32, #tpu.memory_space<vmem>>, vector<2x16x128xf32>
    tpu.vector_store %arg10[%c0_53, %c1_54, %c0_55], %71 {strides = array<i32>} : memref<2x18x128xf32, #tpu.memory_space<vmem>>, vector<2x16x128xf32>,
    %c0_56 = arith.constant 0 : index
    %c0_57 = arith.constant 0 : index
    %c0_58 = arith.constant 0 : index
    %73 = vector.load %arg10[%c0_56, %c0_57, %c0_58] : memref<2x18x128xf32, #tpu.memory_space<vmem>>, vector<2x16x128xf32>
    %74 = vector.shape_cast %73 : vector<2x16x128xf32> to vector<32x128xf32>
    %c0_59 = arith.constant 0 : index
    %c0_60 = arith.constant 0 : index
    %c0_61 = arith.constant 0 : index
    %75 = vector.load %arg5[%c0_59, %c0_60, %c0_61] : memref<3x128x128xf32, #tpu.memory_space<vmem>>, vector<1x128x128xf32>
    %76 = vector.shape_cast %75 : vector<1x128x128xf32> to vector<128x128xf32>
    %cst_62 = arith.constant dense<0.000000e+00> : vector<32x128xf32>
    %77 = tpu.matmul %74, %76, %cst_62 {dimension_numbers = #tpu.dot_dimension_numbers<[1], [0], [0], [1], [0, 0, 1, 1], [], []>} : vector<32x128xf32>, vector<128x128xf32>, vector<32x128xf32> -> vector<32x128xf32>
    %c0_63 = arith.constant 0 : index
    %c1_64 = arith.constant 1 : index
    %c0_65 = arith.constant 0 : index
    %78 = vector.load %arg10[%c0_63, %c1_64, %c0_65] : memref<2x18x128xf32, #tpu.memory_space<vmem>>, vector<2x16x128xf32>
    %79 = vector.shape_cast %78 : vector<2x16x128xf32> to vector<32x128xf32>
    %c1_66 = arith.constant 1 : index
    %c0_67 = arith.constant 0 : index
    %c0_68 = arith.constant 0 : index
    %80 = vector.load %arg5[%c1_66, %c0_67, %c0_68] : memref<3x128x128xf32, #tpu.memory_space<vmem>>, vector<1x128x128xf32>
    %81 = vector.shape_cast %80 : vector<1x128x128xf32> to vector<128x128xf32>
    %cst_69 = arith.constant dense<0.000000e+00> : vector<32x128xf32>
    %82 = tpu.matmul %79, %81, %cst_69 {dimension_numbers = #tpu.dot_dimension_numbers<[1], [0], [0], [1], [0, 0, 1, 1], [], []>} : vector<32x128xf32>, vector<128x128xf32>, vector<32x128xf32> -> vector<32x128xf32>
    %83 = arith.addf %77, %82 : vector<32x128xf32>
    %c0_70 = arith.constant 0 : index
    %c2_71 = arith.constant 2 : index
    %c0_72 = arith.constant 0 : index
    %84 = vector.load %arg10[%c0_70, %c2_71, %c0_72] : memref<2x18x128xf32, #tpu.memory_space<vmem>>, vector<2x16x128xf32>
    %85 = vector.shape_cast %84 : vector<2x16x128xf32> to vector<32x128xf32>
    %c2_73 = arith.constant 2 : index
    %c0_74 = arith.constant 0 : index
    %c0_75 = arith.constant 0 : index
    %86 = vector.load %arg5[%c2_73, %c0_74, %c0_75] : memref<3x128x128xf32, #tpu.memory_space<vmem>>, vector<1x128x128xf32>
    %87 = vector.shape_cast %86 : vector<1x128x128xf32> to vector<128x128xf32>
    %cst_76 = arith.constant dense<0.000000e+00> : vector<32x128xf32>
    %88 = tpu.matmul %85, %87, %cst_76 {dimension_numbers = #tpu.dot_dimension_numbers<[1], [0], [0], [1], [0, 0, 1, 1], [], []>} : vector<32x128xf32>, vector<128x128xf32>, vector<32x128xf32> -> vector<32x128xf32>
    %89 = arith.addf %83, %88 : vector<32x128xf32>
    %c0_77 = arith.constant 0 : index
    %c0_78 = arith.constant 0 : index
    %90 = vector.load %arg6[%c0_77, %c0_78] : memref<1x128xf32, #tpu.memory_space<vmem>>, vector<1x128xf32>
    %c0_79 = arith.constant 0 : index
    %c0_80 = arith.constant 0 : index
    %91 = vector.load %arg7[%c0_79, %c0_80] : memref<1x128xf32, #tpu.memory_space<vmem>>, vector<1x128xf32>
    %cst_81 = arith.constant dense<0.000000e+00> : vector<128xf32>
    %92 = vector.multi_reduction <add>, %89, %cst_81 [0] : vector<32x128xf32> to vector<128xf32>
    %93 = vector.shape_cast %92 : vector<128xf32> to vector<1x128xf32>
    %94 = arith.mulf %89, %89 : vector<32x128xf32>
    %cst_82 = arith.constant dense<0.000000e+00> : vector<128xf32>
    %95 = vector.multi_reduction <add>, %94, %cst_82 [0] : vector<32x128xf32> to vector<128xf32>
    %96 = vector.shape_cast %95 : vector<128xf32> to vector<1x128xf32>
    %c64_i32_83 = arith.constant 64 : i32
    %97 = tpu.dynamic_rotate %93 by %c64_i32_83 dim 1 : vector<1x128xf32>, i32 -> vector<1x128xf32>
    %98 = arith.addf %93, %97 : vector<1x128xf32>
    %c32_i32_84 = arith.constant 32 : i32
    %99 = tpu.dynamic_rotate %98 by %c32_i32_84 dim 1 : vector<1x128xf32>, i32 -> vector<1x128xf32>
    %100 = arith.addf %98, %99 : vector<1x128xf32>
    %c16_i32_85 = arith.constant 16 : i32
    %101 = tpu.dynamic_rotate %100 by %c16_i32_85 dim 1 : vector<1x128xf32>, i32 -> vector<1x128xf32>
    %102 = arith.addf %100, %101 : vector<1x128xf32>
    %c8_i32_86 = arith.constant 8 : i32
    %103 = tpu.dynamic_rotate %102 by %c8_i32_86 dim 1 : vector<1x128xf32>, i32 -> vector<1x128xf32>
    %104 = arith.addf %102, %103 : vector<1x128xf32>
    %cst_87 = arith.constant 0.001953125 : f32
    %105 = vector.broadcast %cst_87 : f32 to vector<1x128xf32>
    %106 = arith.mulf %104, %105 : vector<1x128xf32>
    %c64_i32_88 = arith.constant 64 : i32
    %107 = tpu.dynamic_rotate %96 by %c64_i32_88 dim 1 : vector<1x128xf32>, i32 -> vector<1x128xf32>
    %108 = arith.addf %96, %107 : vector<1x128xf32>
    %c32_i32_89 = arith.constant 32 : i32
    %109 = tpu.dynamic_rotate %108 by %c32_i32_89 dim 1 : vector<1x128xf32>, i32 -> vector<1x128xf32>
    %110 = arith.addf %108, %109 : vector<1x128xf32>
    %c16_i32_90 = arith.constant 16 : i32
    %111 = tpu.dynamic_rotate %110 by %c16_i32_90 dim 1 : vector<1x128xf32>, i32 -> vector<1x128xf32>
    %112 = arith.addf %110, %111 : vector<1x128xf32>
    %c8_i32_91 = arith.constant 8 : i32
    %113 = tpu.dynamic_rotate %112 by %c8_i32_91 dim 1 : vector<1x128xf32>, i32 -> vector<1x128xf32>
    %114 = arith.addf %112, %113 : vector<1x128xf32>
    %cst_92 = arith.constant 0.001953125 : f32
    %115 = vector.broadcast %cst_92 : f32 to vector<1x128xf32>
    %116 = arith.mulf %114, %115 : vector<1x128xf32>
    %117 = arith.mulf %106, %106 : vector<1x128xf32>
    %118 = arith.subf %116, %117 : vector<1x128xf32>
    %cst_93 = arith.constant 9.99999974E-6 : f32
    %119 = vector.broadcast %cst_93 : f32 to vector<1x128xf32>
    %120 = arith.addf %118, %119 : vector<1x128xf32>
    %121 = math.rsqrt %120 : vector<1x128xf32>
    %122 = arith.mulf %90, %121 : vector<1x128xf32>
    %123 = arith.mulf %106, %122 : vector<1x128xf32>
    %124 = arith.subf %91, %123 : vector<1x128xf32>
    %125 = vector.broadcast %122 : vector<1x128xf32> to vector<32x128xf32>
    %126 = arith.mulf %89, %125 : vector<32x128xf32>
    %127 = vector.broadcast %124 : vector<1x128xf32> to vector<32x128xf32>
    %128 = arith.addf %126, %127 : vector<32x128xf32>
    %cst_94 = arith.constant 0.000000e+00 : f32
    %129 = vector.broadcast %cst_94 : f32 to vector<32x128xf32>
    %130 = arith.cmpf ogt, %128, %129 : vector<32x128xf32>
    %cst_95 = arith.constant 0.00999999977 : f32
    %131 = vector.broadcast %cst_95 : f32 to vector<32x128xf32>
    %132 = arith.mulf %131, %128 : vector<32x128xf32>
    %133 = arith.select %130, %128, %132 : vector<32x128xi1>, vector<32x128xf32>
    %c0_96 = arith.constant 0 : index
    %c0_97 = arith.constant 0 : index
    %134 = vector.load %arg8[%c0_96, %c0_97] : memref<32x128xf32, #tpu.memory_space<vmem>>, vector<32x128xf32>
    tpu.vector_store %arg8[%c0_96, %c0_97], %133 {strides = array<i32>} : memref<32x128xf32, #tpu.memory_space<vmem>>, vector<32x128xf32>,
    return
  }
  func.func @transform_0(%arg0: i32) -> (i32, i32, i32) {
    %c0_i32 = arith.constant 0 : i32
    %c0_i32_0 = arith.constant 0 : i32
    %c0_i32_1 = arith.constant 0 : i32
    %c0_i32_2 = arith.constant 0 : i32
    return %c0_i32, %c0_i32_0, %c0_i32_1 : i32, i32, i32
  }
  func.func @transform_1(%arg0: i32) -> (i32, i32, i32) {
    %c0_i32 = arith.constant 0 : i32
    %c0_i32_0 = arith.constant 0 : i32
    %c0_i32_1 = arith.constant 0 : i32
    %c0_i32_2 = arith.constant 0 : i32
    return %c0_i32, %c0_i32_0, %c0_i32_1 : i32, i32, i32
  }
  func.func @transform_2(%arg0: i32) -> (i32, i32) {
    %c0_i32 = arith.constant 0 : i32
    %c0_i32_0 = arith.constant 0 : i32
    %c0_i32_1 = arith.constant 0 : i32
    return %c0_i32, %c0_i32_0 : i32, i32
  }
  func.func @transform_3(%arg0: i32) -> (i32, i32) {
    %c0_i32 = arith.constant 0 : i32
    %c0_i32_0 = arith.constant 0 : i32
    %c0_i32_1 = arith.constant 0 : i32
    return %c0_i32, %c0_i32_0 : i32, i32
  }
  func.func @transform_4(%arg0: i32) -> (i32, i32, i32) {
    %c0_i32 = arith.constant 0 : i32
    %c0_i32_0 = arith.constant 0 : i32
    %c0_i32_1 = arith.constant 0 : i32
    %c0_i32_2 = arith.constant 0 : i32
    return %c0_i32, %c0_i32_0, %c0_i32_1 : i32, i32, i32
  }
  func.func @transform_5(%arg0: i32) -> (i32, i32) {
    %c0_i32 = arith.constant 0 : i32
    %c0_i32_0 = arith.constant 0 : i32
    %c0_i32_1 = arith.constant 0 : i32
    return %c0_i32, %c0_i32_0 : i32, i32
  }
  func.func @transform_6(%arg0: i32) -> (i32, i32) {
    %c0_i32 = arith.constant 0 : i32
    %c0_i32_0 = arith.constant 0 : i32
    %c0_i32_1 = arith.constant 0 : i32
    return %c0_i32, %c0_i32_0 : i32, i32
  }
  func.func @transform_7(%arg0: i32) -> (i32, i32) {
    %c0_i32 = arith.constant 0 : i32
    %c0_i32_0 = arith.constant 0 : i32
    %c0_i32_1 = arith.constant 0 : i32
    return %c0_i32, %c0_i32_0 : i32, i32
  }
}

</mosaic_0001>

<llo_original>
// kernel: conv_relu_forward.1
$region0: #{conv_relu_forward.1}
  #allocation0 [shape = 'u32[]', space=smem, size = 0x4, offset = 0x4, fixed_abs, tag = 'smem constant byte address 0x4 - core index']
  #allocation1 [shape = 'u32[144,128]{1,0:T(1,128)}', space=vmem, size = 0x12000, scoped, tag = 'internal scratch']
  #allocation2 [shape = 'f32[2,18,64]{2,1,0:T(8,128)}', space=vmem, size = 0x6000, scoped, tag = 'scratch operand']
  #allocation3 [shape = 'f32[2,18,128]{2,1,0:T(8,128)}', space=vmem, size = 0x6000, scoped, tag = 'scratch operand']
  %s0 = inlined_call_operand.vmem [shape: f32[2,16,64], index: 0, kind: input, shape index: {}]
  %s1 = inlined_call_operand.vmem [shape: f32[3,64,128], index: 1, kind: input, shape index: {}]
  %s2 = inlined_call_operand.vmem [shape: f32[1,128], index: 2, kind: input, shape index: {}]
  %s3 = inlined_call_operand.vmem [shape: f32[1,128], index: 3, kind: input, shape index: {}]
  %s4 = inlined_call_operand.vmem [shape: f32[3,128,128], index: 4, kind: input, shape index: {}]
  %s5 = inlined_call_operand.vmem [shape: f32[1,128], index: 5, kind: input, shape index: {}]
  %s6 = inlined_call_operand.vmem [shape: f32[1,128], index: 6, kind: input, shape index: {}]
  %s7 = inlined_call_operand.vmem [shape: f32[32,128], index: 7, kind: output, shape index: {}]
  %s8 = sld [smem:[#allocation0]]
  $region38: #{conv_relu_forward.1} parent=0
    _
  %s10 = ssub.s32 1, %s8
  %s11 = scalar_select 0, %s10, %s8
  // Predicated region
  $region2: #{conv_relu_forward.1} parent=0 // pred_check
    _
  $region3: #{conv_relu_forward.1} parent=0 // pred_check_branch
    %13 = sbr.rel (0) target = $region5
  $region4: #{conv_relu_forward.1} parent=0 // pred_region
    _
  $region5: #{conv_relu_forward.1} parent=0 // pred_fallthru
    _
  // Predicated region
  $region6: #{conv_relu_forward.1} parent=0 // pred_check
    _
  $region7: #{conv_relu_forward.1} parent=0 // pred_check_branch
    %15 = sbr.rel (0) target = $region9
  $region8: #{conv_relu_forward.1} parent=0 // pred_region
    _
  $region9: #{conv_relu_forward.1} parent=0 // pred_fallthru
    _
  // Predicated region
  $region10: #{conv_relu_forward.1} parent=0 // pred_check
    _
  $region11: #{conv_relu_forward.1} parent=0 // pred_check_branch
    %17 = sbr.rel (0) target = $region13
  $region12: #{conv_relu_forward.1} parent=0 // pred_region
    _
  $region13: #{conv_relu_forward.1} parent=0 // pred_fallthru
    _
  // Predicated region
  $region14: #{conv_relu_forward.1} parent=0 // pred_check
    _
  $region15: #{conv_relu_forward.1} parent=0 // pred_check_branch
    %19 = sbr.rel (0) target = $region17
  $region16: #{conv_relu_forward.1} parent=0 // pred_region
    _
  $region17: #{conv_relu_forward.1} parent=0 // pred_fallthru
    _
  // Predicated region
  $region18: #{conv_relu_forward.1} parent=0 // pred_check
    _
  $region19: #{conv_relu_forward.1} parent=0 // pred_check_branch
    %21 = sbr.rel (0) target = $region21
  $region20: #{conv_relu_forward.1} parent=0 // pred_region
    _
  $region21: #{conv_relu_forward.1} parent=0 // pred_fallthru
    _
  // Predicated region
  $region22: #{conv_relu_forward.1} parent=0 // pred_check
    _
  $region23: #{conv_relu_forward.1} parent=0 // pred_check_branch
    %23 = sbr.rel (0) target = $region25
  $region24: #{conv_relu_forward.1} parent=0 // pred_region
    _
  $region25: #{conv_relu_forward.1} parent=0 // pred_fallthru
    _
  // Predicated region
  $region26: #{conv_relu_forward.1} parent=0 // pred_check
    _
  $region27: #{conv_relu_forward.1} parent=0 // pred_check_branch
    %25 = sbr.rel (0) target = $region29
  $region28: #{conv_relu_forward.1} parent=0 // pred_region
    _
  $region29: #{conv_relu_forward.1} parent=0 // pred_fallthru
    _
  %vm26 = vcmask 516096
  %27 = vst.msk [vmem:[#allocation2] sm:$0x1] %vm26, 0.0
  %28 = vst.msk [vmem:[#allocation2 + $0x18] sm:$0x1] %vm26, 0.0
  %29 = vst.msk [vmem:[#allocation2 + $0x11] sm:$0x1] %vm26, 0.0
  %30 = vst.msk [vmem:[#allocation2 + $0x29] sm:$0x1] %vm26, 0.0
  %v31 = vld [vmem:[%s0] sm:$0xff]
  %v32 = vld [vmem:[%s0 + $0x8] sm:$0xff]
  %v33 = vld [vmem:[%s0 + $0x10] sm:$0xff]
  %v34 = vld [vmem:[%s0 + $0x18] sm:$0xff]
  %vm35 = vcmask 523264
  %36 = vst.msk [vmem:[#allocation2 + $0x1] sm:$0xff] %vm35, %v31
  %37 = vst.msk [vmem:[#allocation2 + $0x9] sm:$0xff] %vm35, %v32
  %38 = vst.msk [vmem:[#allocation2 + $0x19] sm:$0xff] %vm35, %v33
  %39 = vst.msk [vmem:[#allocation2 + $0x21] sm:$0xff] %vm35, %v34
  %v40 = vld [vmem:[#allocation2] sm:$0xff]
  %v41 = vld [vmem:[#allocation2 + $0x8] sm:$0xff]
  %v42 = vld [vmem:[#allocation2 + $0x18] sm:$0xff]
  %v43 = vld [vmem:[#allocation2 + $0x20] sm:$0xff]
  %v44 = vld [vmem:[%s1] sm:$0xff]
  %v45 = vld [vmem:[%s1 + $0x8] sm:$0xff]
  %v46 = vld [vmem:[%s1 + $0x10] sm:$0xff]
  %v47 = vld [vmem:[%s1 + $0x18] sm:$0xff]
  %v48 = vld [vmem:[%s1 + $0x20] sm:$0xff]
  %v49 = vld [vmem:[%s1 + $0x28] sm:$0xff]
  %v50 = vld [vmem:[%s1 + $0x30] sm:$0xff]
  %v51 = vld [vmem:[%s1 + $0x38] sm:$0xff]
  %v52 = vld [vmem:[#allocation2 + $0x1] sm:$0xff]
  %v53 = vld [vmem:[#allocation2 + $0x9] sm:$0xff]
  %v54 = vld [vmem:[#allocation2 + $0x19] sm:$0xff]
  %v55 = vld [vmem:[#allocation2 + $0x21] sm:$0xff]
  %s56 = scalar_lea.vmem %s1, 64
  %v57 = vld [vmem:[%s56] sm:$0xff]
  %v58 = vld [vmem:[%s56 + $0x8] sm:$0xff]
  %v59 = vld [vmem:[%s56 + $0x10] sm:$0xff]
  %v60 = vld [vmem:[%s56 + $0x18] sm:$0xff]
  %v61 = vld [vmem:[%s56 + $0x20] sm:$0xff]
  %v62 = vld [vmem:[%s56 + $0x28] sm:$0xff]
  %v63 = vld [vmem:[%s56 + $0x30] sm:$0xff]
  %v64 = vld [vmem:[%s56 + $0x38] sm:$0xff]
  %v66 = vsel %vm35, %v52, 0
  %v69 = vsel %vm35, %v53, 0
  %v72 = vsel %vm35, %v54, 0
  %v75 = vsel %vm35, %v55, 0
  %77 = vmatprep.subr.mxu0 0.0
  %78 = vmatpush1.msra.mxu0 0.0
  %79 = vmatprep.subr.mxu0 0.0
  %80 = vmatpush1.msra.mxu0 0.0
  %81 = vmatprep.subr.mxu0 0.0
  %82 = vmatpush1.msra.mxu0 0.0
  %83 = vmatprep.subr.mxu0 0.0
  %84 = vmatpush1.msra.mxu0 0.0
  %85 = vmatprep.subr.mxu0 0.0
  %86 = vmatpush1.msra.mxu0 0.0
  %87 = vmatprep.subr.mxu0 0.0
  %88 = vmatpush1.msra.mxu0 0.0
  %89 = vmatprep.subr.mxu0 0.0
  %90 = vmatpush1.msra.mxu0 0.0
  %91 = vmatprep.subr.mxu0 0.0
  %92 = vmatpush1.msra.mxu0 0.0
  %93 = vmatprep.subr.mxu0 0.0
  %94 = vmatpush1.msra.mxu0 %v64
  %95 = vmatprep.subr.mxu0 0.0
  %96 = vmatpush1.msra.mxu0 %v63
  %97 = vmatprep.subr.mxu0 0.0
  %98 = vmatpush1.msra.mxu0 %v62
  %99 = vmatprep.subr.mxu0 0.0
  %100 = vmatpush1.msra.mxu0 %v61
  %101 = vmatprep.subr.mxu0 0.0
  %102 = vmatpush1.msra.mxu0 %v60
  %103 = vmatprep.subr.mxu0 0.0
  %104 = vmatpush1.msra.mxu0 %v59
  %105 = vmatprep.subr.mxu0 0.0
  %106 = vmatpush1.msra.mxu0 %v58
  %107 = vmatprep.subr.mxu0 0.0
  %108 = vmatpush1.msra.mxu0 %v57
  %109 = vmatprep.subr.mxu0 0.0
  %110 = vmatpush2.msra.mxu0 0.0
  %111 = vmatprep.subr.mxu0 0.0
  %112 = vmatpush2.msra.mxu0 0.0
  %113 = vmatprep.subr.mxu0 0.0
  %114 = vmatpush2.msra.mxu0 0.0
  %115 = vmatprep.subr.mxu0 0.0
  %116 = vmatpush2.msra.mxu0 0.0
  %117 = vmatprep.subr.mxu0 0.0
  %118 = vmatpush2.msra.mxu0 0.0
  %119 = vmatprep.subr.mxu0 0.0
  %120 = vmatpush2.msra.mxu0 0.0
  %121 = vmatprep.subr.mxu0 0.0
  %122 = vmatpush2.msra.mxu0 0.0
  %123 = vmatprep.subr.mxu0 0.0
  %124 = vmatpush2.msra.mxu0 0.0
  %125 = vmatprep.subr.mxu0 0.0
  %126 = vmatpush2.msra.mxu0 0.0
  %127 = vmatprep.subr.mxu0 0.0
  %128 = vmatpush2.msra.mxu0 0.0
  %129 = vmatprep.subr.mxu0 0.0
  %130 = vmatpush2.msra.mxu0 0.0
  %131 = vmatprep.subr.mxu0 0.0
  %132 = vmatpush2.msra.mxu0 0.0
  %133 = vmatprep.subr.mxu0 0.0
  %134 = vmatpush2.msra.mxu0 0.0
  %135 = vmatprep.subr.mxu0 0.0
  %136 = vmatpush2.msra.mxu0 0.0
  %137 = vmatprep.subr.mxu0 0.0
  %138 = vmatpush2.msra.mxu0 0.0
  %139 = vmatprep.subr.mxu0 0.0
  %140 = vmatpush2.msra.mxu0 0.0
  %141 = vmatprep.mubr.f32.mxu0 0.0
  %142 = vmatmul.mubr.f32.gmra.mxu0 %v66
  %v143 = vpop.f32.mrf.mxu0
  %v144 = vadd.f32 0.0, %v143
  %v145 = vpop.f32.mrf.mxu0
  %146 = vmatprep.mubr.f32.mxu0 0.0
  %147 = vmatmul.mubr.f32.gmra.mxu0 %v69
  %v148 = vpop.f32.mrf.mxu0
  %v149 = vadd.f32 0.0, %v148
  %v150 = vpop.f32.mrf.mxu0
  %151 = vmatprep.mubr.f32.mxu0 0.0
  %152 = vmatmul.mubr.f32.gmra.mxu0 %v72
  %v153 = vpop.f32.mrf.mxu0
  %v154 = vadd.f32 0.0, %v153
  %v155 = vpop.f32.mrf.mxu0
  %156 = vmatprep.mubr.f32.mxu0 0.0
  %157 = vmatmul.mubr.f32.gmra.mxu0 %v75
  %v158 = vpop.f32.mrf.mxu0
  %v159 = vadd.f32 0.0, %v158
  %v160 = vpop.f32.mrf.mxu0
  %161 = vdwg.mxu0
  %v163 = vsel %vm35, %v40, 0
  %v166 = vsel %vm35, %v41, 0
  %v169 = vsel %vm35, %v42, 0
  %v172 = vsel %vm35, %v43, 0
  %174 = vmatprep.subr.mxu0 0.0
  %175 = vmatpush1.msra.mxu0 0.0
  %176 = vmatprep.subr.mxu0 0.0
  %177 = vmatpush1.msra.mxu0 0.0
  %178 = vmatprep.subr.mxu0 0.0
  %179 = vmatpush1.msra.mxu0 0.0
  %180 = vmatprep.subr.mxu0 0.0
  %181 = vmatpush1.msra.mxu0 0.0
  %182 = vmatprep.subr.mxu0 0.0
  %183 = vmatpush1.msra.mxu0 0.0
  %184 = vmatprep.subr.mxu0 0.0
  %185 = vmatpush1.msra.mxu0 0.0
  %186 = vmatprep.subr.mxu0 0.0
  %187 = vmatpush1.msra.mxu0 0.0
  %188 = vmatprep.subr.mxu0 0.0
  %189 = vmatpush1.msra.mxu0 0.0
  %190 = vmatprep.subr.mxu0 0.0
  %191 = vmatpush1.msra.mxu0 %v51
  %192 = vmatprep.subr.mxu0 0.0
  %193 = vmatpush1.msra.mxu0 %v50
  %194 = vmatprep.subr.mxu0 0.0
  %195 = vmatpush1.msra.mxu0 %v49
  %196 = vmatprep.subr.mxu0 0.0
  %197 = vmatpush1.msra.mxu0 %v48
  %198 = vmatprep.subr.mxu0 0.0
  %199 = vmatpush1.msra.mxu0 %v47
  %200 = vmatprep.subr.mxu0 0.0
  %201 = vmatpush1.msra.mxu0 %v46
  %202 = vmatprep.subr.mxu0 0.0
  %203 = vmatpush1.msra.mxu0 %v45
  %204 = vmatprep.subr.mxu0 0.0
  %205 = vmatpush1.msra.mxu0 %v44
  %206 = vmatprep.subr.mxu0 0.0
  %207 = vmatpush2.msra.mxu0 0.0
  %208 = vmatprep.subr.mxu0 0.0
  %209 = vmatpush2.msra.mxu0 0.0
  %210 = vmatprep.subr.mxu0 0.0
  %211 = vmatpush2.msra.mxu0 0.0
  %212 = vmatprep.subr.mxu0 0.0
  %213 = vmatpush2.msra.mxu0 0.0
  %214 = vmatprep.subr.mxu0 0.0
  %215 = vmatpush2.msra.mxu0 0.0
  %216 = vmatprep.subr.mxu0 0.0
  %217 = vmatpush2.msra.mxu0 0.0
  %218 = vmatprep.subr.mxu0 0.0
  %219 = vmatpush2.msra.mxu0 0.0
  %220 = vmatprep.subr.mxu0 0.0
  %221 = vmatpush2.msra.mxu0 0.0
  %222 = vmatprep.subr.mxu0 0.0
  %223 = vmatpush2.msra.mxu0 0.0
  %224 = vmatprep.subr.mxu0 0.0
  %225 = vmatpush2.msra.mxu0 0.0
  %226 = vmatprep.subr.mxu0 0.0
  %227 = vmatpush2.msra.mxu0 0.0
  %228 = vmatprep.subr.mxu0 0.0
  %229 = vmatpush2.msra.mxu0 0.0
  %230 = vmatprep.subr.mxu0 0.0
  %231 = vmatpush2.msra.mxu0 0.0
  %232 = vmatprep.subr.mxu0 0.0
  %233 = vmatpush2.msra.mxu0 0.0
  %234 = vmatprep.subr.mxu0 0.0
  %235 = vmatpush2.msra.mxu0 0.0
  %236 = vmatprep.subr.mxu0 0.0
  %237 = vmatpush2.msra.mxu0 0.0
  %238 = vmatprep.mubr.f32.mxu0 0.0
  %239 = vmatmul.mubr.f32.gmra.mxu0 %v163
  %v240 = vpop.f32.mrf.mxu0
  %v241 = vadd.f32 %v144, %v240
  %v242 = vpop.f32.mrf.mxu0
  %243 = vmatprep.mubr.f32.mxu0 0.0
  %244 = vmatmul.mubr.f32.gmra.mxu0 %v166
  %v245 = vpop.f32.mrf.mxu0
  %v246 = vadd.f32 %v149, %v245
  %v247 = vpop.f32.mrf.mxu0
  %248 = vmatprep.mubr.f32.mxu0 0.0
  %249 = vmatmul.mubr.f32.gmra.mxu0 %v169
  %v250 = vpop.f32.mrf.mxu0
  %v251 = vadd.f32 %v154, %v250
  %v252 = vpop.f32.mrf.mxu0
  %253 = vmatprep.mubr.f32.mxu0 0.0
  %254 = vmatmul.mubr.f32.gmra.mxu0 %v172
  %v255 = vpop.f32.mrf.mxu0
  %v256 = vadd.f32 %v159, %v255
  %v257 = vpop.f32.mrf.mxu0
  %258 = vdwg.mxu0
  %v259 = vld [vmem:[#allocation2 + $0x2] sm:$0xff]
  %v260 = vld [vmem:[#allocation2 + $0xa] sm:$0xff]
  %v261 = vld [vmem:[#allocation2 + $0x1a] sm:$0xff]
  %v262 = vld [vmem:[#allocation2 + $0x22] sm:$0xff]
  %s263 = scalar_lea.vmem %s1, 128
  %v264 = vld [vmem:[%s263] sm:$0xff]
  %v265 = vld [vmem:[%s263 + $0x8] sm:$0xff]
  %v266 = vld [vmem:[%s263 + $0x10] sm:$0xff]
  %v267 = vld [vmem:[%s263 + $0x18] sm:$0xff]
  %v268 = vld [vmem:[%s263 + $0x20] sm:$0xff]
  %v269 = vld [vmem:[%s263 + $0x28] sm:$0xff]
  %v270 = vld [vmem:[%s263 + $0x30] sm:$0xff]
  %v271 = vld [vmem:[%s263 + $0x38] sm:$0xff]
  %v273 = vsel %vm35, %v259, 0
  %v276 = vsel %vm35, %v260, 0
  %v279 = vsel %vm35, %v261, 0
  %v282 = vsel %vm35, %v262, 0
  %284 = vmatprep.subr.mxu0 0.0
  %285 = vmatpush1.msra.mxu0 0.0
  %286 = vmatprep.subr.mxu0 0.0
  %287 = vmatpush1.msra.mxu0 0.0
  %288 = vmatprep.subr.mxu0 0.0
  %289 = vmatpush1.msra.mxu0 0.0
  %290 = vmatprep.subr.mxu0 0.0
  %291 = vmatpush1.msra.mxu0 0.0
  %292 = vmatprep.subr.mxu0 0.0
  %293 = vmatpush1.msra.mxu0 0.0
  %294 = vmatprep.subr.mxu0 0.0
  %295 = vmatpush1.msra.mxu0 0.0
  %296 = vmatprep.subr.mxu0 0.0
  %297 = vmatpush1.msra.mxu0 0.0
  %298 = vmatprep.subr.mxu0 0.0
  %299 = vmatpush1.msra.mxu0 0.0
  %300 = vmatprep.subr.mxu0 0.0
  %301 = vmatpush1.msra.mxu0 %v271
  %302 = vmatprep.subr.mxu0 0.0
  %303 = vmatpush1.msra.mxu0 %v270
  %304 = vmatprep.subr.mxu0 0.0
  %305 = vmatpush1.msra.mxu0 %v269
  %306 = vmatprep.subr.mxu0 0.0
  %307 = vmatpush1.msra.mxu0 %v268
  %308 = vmatprep.subr.mxu0 0.0
  %309 = vmatpush1.msra.mxu0 %v267
  %310 = vmatprep.subr.mxu0 0.0
  %311 = vmatpush1.msra.mxu0 %v266
  %312 = vmatprep.subr.mxu0 0.0
  %313 = vmatpush1.msra.mxu0 %v265
  %314 = vmatprep.subr.mxu0 0.0
  %315 = vmatpush1.msra.mxu0 %v264
  %316 = vmatprep.subr.mxu0 0.0
  %317 = vmatpush2.msra.mxu0 0.0
  %318 = vmatprep.subr.mxu0 0.0
  %319 = vmatpush2.msra.mxu0 0.0
  %320 = vmatprep.subr.mxu0 0.0
  %321 = vmatpush2.msra.mxu0 0.0
  %322 = vmatprep.subr.mxu0 0.0
  %323 = vmatpush2.msra.mxu0 0.0
  %324 = vmatprep.subr.mxu0 0.0
  %325 = vmatpush2.msra.mxu0 0.0
  %326 = vmatprep.subr.mxu0 0.0
  %327 = vmatpush2.msra.mxu0 0.0
  %328 = vmatprep.subr.mxu0 0.0
  %329 = vmatpush2.msra.mxu0 0.0
  %330 = vmatprep.subr.mxu0 0.0
  %331 = vmatpush2.msra.mxu0 0.0
  %332 = vmatprep.subr.mxu0 0.0
  %333 = vmatpush2.msra.mxu0 0.0
  %334 = vmatprep.subr.mxu0 0.0
  %335 = vmatpush2.msra.mxu0 0.0
  %336 = vmatprep.subr.mxu0 0.0
  %337 = vmatpush2.msra.mxu0 0.0
  %338 = vmatprep.subr.mxu0 0.0
  %339 = vmatpush2.msra.mxu0 0.0
  %340 = vmatprep.subr.mxu0 0.0
  %341 = vmatpush2.msra.mxu0 0.0
  %342 = vmatprep.subr.mxu0 0.0
  %343 = vmatpush2.msra.mxu0 0.0
  %344 = vmatprep.subr.mxu0 0.0
  %345 = vmatpush2.msra.mxu0 0.0
  %346 = vmatprep.subr.mxu0 0.0
  %347 = vmatpush2.msra.mxu0 0.0
  %348 = vmatprep.mubr.f32.mxu0 0.0
  %349 = vmatmul.mubr.f32.gmra.mxu0 %v273
  %v350 = vpop.f32.mrf.mxu0
  %v351 = vadd.f32 0.0, %v350
  %v352 = vpop.f32.mrf.mxu0
  %353 = vmatprep.mubr.f32.mxu0 0.0
  %354 = vmatmul.mubr.f32.gmra.mxu0 %v276
  %v355 = vpop.f32.mrf.mxu0
  %v356 = vadd.f32 0.0, %v355
  %v357 = vpop.f32.mrf.mxu0
  %358 = vmatprep.mubr.f32.mxu0 0.0
  %359 = vmatmul.mubr.f32.gmra.mxu0 %v279
  %v360 = vpop.f32.mrf.mxu0
  %v361 = vadd.f32 0.0, %v360
  %v362 = vpop.f32.mrf.mxu0
  %363 = vmatprep.mubr.f32.mxu0 0.0
  %364 = vmatmul.mubr.f32.gmra.mxu0 %v282
  %v365 = vpop.f32.mrf.mxu0
  %v366 = vadd.f32 0.0, %v365
  %v367 = vpop.f32.mrf.mxu0
  %368 = vdwg.mxu0
  %v369 = vadd.f32 %v241, %v351
  %v370 = vadd.f32 %v246, %v356
  %v371 = vadd.f32 %v251, %v361
  %v372 = vadd.f32 %v256, %v366
  %v373 = vld [vmem:[%s2] sm:$0x1]
  %v374 = vld [vmem:[%s3] sm:$0x1]
  %v375 = vadd.f32 %v369, %v370
  %v376 = vadd.f32 %v375, %v371
  %v377 = vadd.f32 %v376, %v372
  %v378 = vrot.slane %v377, 4
  %v379 = vadd.f32 %v377, %v378
  %v380 = vrot.slane %v379, 2
  %v381 = vadd.f32 %v379, %v380
  %v382 = vrot.slane %v381, 1
  %v383 = vadd.f32 %v381, %v382
  %v384 = vmul.f32 %v369, %v369
  %v385 = vmul.f32 %v370, %v370
  %v386 = vmul.f32 %v371, %v371
  %v387 = vmul.f32 %v372, %v372
  %v388 = vadd.f32 %v384, %v385
  %v389 = vadd.f32 %v388, %v386
  %v390 = vadd.f32 %v389, %v387
  %v391 = vrot.slane %v390, 4
  %v392 = vadd.f32 %v390, %v391
  %v393 = vrot.slane %v392, 2
  %v394 = vadd.f32 %v392, %v393
  %v395 = vrot.slane %v394, 1
  %v396 = vadd.f32 %v394, %v395
  %397 = vrot.lane.b32.xlu0 %v383, 64
  %v398 = vpop.permute.xlu0 %397
  %v399 = vadd.f32 %v383, %v398
  %400 = vrot.lane.b32.xlu0 %v399, 32
  %v401 = vpop.permute.xlu0 %400
  %v402 = vadd.f32 %v399, %v401
  %403 = vrot.lane.b32.xlu0 %v402, 16
  %v404 = vpop.permute.xlu0 %403
  %v405 = vadd.f32 %v402, %v404
  %406 = vrot.lane.b32.xlu0 %v405, 8
  %v407 = vpop.permute.xlu0 %406
  %v408 = vadd.f32 %v405, %v407
  %v409 = vmul.f32 %v408, 0.001953125
  %410 = vrot.lane.b32.xlu0 %v396, 64
  %v411 = vpop.permute.xlu0 %410
  %v412 = vadd.f32 %v396, %v411
  %413 = vrot.lane.b32.xlu0 %v412, 32
  %v414 = vpop.permute.xlu0 %413
  %v415 = vadd.f32 %v412, %v414
  %416 = vrot.lane.b32.xlu0 %v415, 16
  %v417 = vpop.permute.xlu0 %416
  %v418 = vadd.f32 %v415, %v417
  %419 = vrot.lane.b32.xlu0 %v418, 8
  %v420 = vpop.permute.xlu0 %419
  %v421 = vadd.f32 %v418, %v420
  %v422 = vmul.f32 %v421, 0.001953125
  %v423 = vmul.f32 %v409, %v409
  %v424 = vsub.f32 %v422, %v423
  %v425 = vadd.f32 %v424, 1e-05
  %v426 = vrsqrt.pop %v425
  %v427 = vmul.f32 %v373, %v426
  %v428 = vmul.f32 %v409, %v427
  %v429 = vsub.f32 %v374, %v428
  %v431 = vlaneseq
  %v432 = vshrl.u32 %v431, 7
  %v433 = vsub.s32 0, %v432
  %v434 = vrot.slane %v427, %v433
  %v436 = vmul.f32 %v369, %v434
  %v437 = vmul.f32 %v370, %v434
  %v438 = vmul.f32 %v371, %v434
  %v439 = vmul.f32 %v372, %v434
  %v441 = vlaneseq
  %v442 = vshrl.u32 %v441, 7
  %v443 = vsub.s32 0, %v442
  %v444 = vrot.slane %v429, %v443
  %v446 = vadd.f32 %v436, %v444
  %v447 = vadd.f32 %v437, %v444
  %v448 = vadd.f32 %v438, %v444
  %v449 = vadd.f32 %v439, %v444
  %vm450 = vcmp.gt.f32.partialorder %v446, 0.0
  %vm451 = vcmp.gt.f32.partialorder %v447, 0.0
  %vm452 = vcmp.gt.f32.partialorder %v448, 0.0
  %vm453 = vcmp.gt.f32.partialorder %v449, 0.0
  %v454 = vmul.f32 %v446, 0.01
  %v455 = vmul.f32 %v447, 0.01
  %v456 = vmul.f32 %v448, 0.01
  %v457 = vmul.f32 %v449, 0.01
  %v458 = vsel %vm450, %v446, %v454
  %v459 = vsel %vm451, %v447, %v455
  %v460 = vsel %vm452, %v448, %v456
  %v461 = vsel %vm453, %v449, %v457
  %462 = vst [vmem:[#allocation3] sm:$0x1] 0.0
  %463 = vst [vmem:[#allocation3 + $0x18] sm:$0x1] 0.0
  %464 = vst [vmem:[#allocation3 + $0x11] sm:$0x1] 0.0
  %465 = vst [vmem:[#allocation3 + $0x29] sm:$0x1] 0.0
  %466 = vst [vmem:[#allocation3 + $0x1] sm:$0xff] %v458
  %467 = vst [vmem:[#allocation3 + $0x9] sm:$0xff] %v459
  %468 = vst [vmem:[#allocation3 + $0x19] sm:$0xff] %v460
  %469 = vst [vmem:[#allocation3 + $0x21] sm:$0xff] %v461
  %v470 = vld [vmem:[#allocation3] sm:$0xff]
  %v471 = vld [vmem:[#allocation3 + $0x8] sm:$0xff]
  %v472 = vld [vmem:[#allocation3 + $0x18] sm:$0xff]
  %v473 = vld [vmem:[#allocation3 + $0x20] sm:$0xff]
  %v474 = vld [vmem:[%s4] sm:$0xff]
  %v475 = vld [vmem:[%s4 + $0x8] sm:$0xff]
  %v476 = vld [vmem:[%s4 + $0x10] sm:$0xff]
  %v477 = vld [vmem:[%s4 + $0x18] sm:$0xff]
  %v478 = vld [vmem:[%s4 + $0x20] sm:$0xff]
  %v479 = vld [vmem:[%s4 + $0x28] sm:$0xff]
  %v480 = vld [vmem:[%s4 + $0x30] sm:$0xff]
  %v481 = vld [vmem:[%s4 + $0x38] sm:$0xff]
  %v482 = vld [vmem:[%s4 + $0x40] sm:$0xff]
  %v483 = vld [vmem:[%s4 + $0x48] sm:$0xff]
  %v484 = vld [vmem:[%s4 + $0x50] sm:$0xff]
  %v485 = vld [vmem:[%s4 + $0x58] sm:$0xff]
  %v486 = vld [vmem:[%s4 + $0x60] sm:$0xff]
  %v487 = vld [vmem:[%s4 + $0x68] sm:$0xff]
  %v488 = vld [vmem:[%s4 + $0x70] sm:$0xff]
  %v489 = vld [vmem:[%s4 + $0x78] sm:$0xff]
  %v490 = vld [vmem:[#allocation3 + $0x1] sm:$0xff]
  %v491 = vld [vmem:[#allocation3 + $0x9] sm:$0xff]
  %v492 = vld [vmem:[#allocation3 + $0x19] sm:$0xff]
  %v493 = vld [vmem:[#allocation3 + $0x21] sm:$0xff]
  %s494 = scalar_lea.vmem %s4, 128
  %v495 = vld [vmem:[%s494] sm:$0xff]
  %v496 = vld [vmem:[%s494 + $0x8] sm:$0xff]
  %v497 = vld [vmem:[%s494 + $0x10] sm:$0xff]
  %v498 = vld [vmem:[%s494 + $0x18] sm:$0xff]
  %v499 = vld [vmem:[%s494 + $0x20] sm:$0xff]
  %v500 = vld [vmem:[%s494 + $0x28] sm:$0xff]
  %v501 = vld [vmem:[%s494 + $0x30] sm:$0xff]
  %v502 = vld [vmem:[%s494 + $0x38] sm:$0xff]
  %v503 = vld [vmem:[%s494 + $0x40] sm:$0xff]
  %v504 = vld [vmem:[%s494 + $0x48] sm:$0xff]
  %v505 = vld [vmem:[%s494 + $0x50] sm:$0xff]
  %v506 = vld [vmem:[%s494 + $0x58] sm:$0xff]
  %v507 = vld [vmem:[%s494 + $0x60] sm:$0xff]
  %v508 = vld [vmem:[%s494 + $0x68] sm:$0xff]
  %v509 = vld [vmem:[%s494 + $0x70] sm:$0xff]
  %v510 = vld [vmem:[%s494 + $0x78] sm:$0xff]
  %511 = vmatprep.subr.mxu0 0.0
  %512 = vmatpush1.msra.mxu0 %v510
  %513 = vmatprep.subr.mxu0 0.0
  %514 = vmatpush1.msra.mxu0 %v509
  %515 = vmatprep.subr.mxu0 0.0
  %516 = vmatpush1.msra.mxu0 %v508
  %517 = vmatprep.subr.mxu0 0.0
  %518 = vmatpush1.msra.mxu0 %v507
  %519 = vmatprep.subr.mxu0 0.0
  %520 = vmatpush1.msra.mxu0 %v506
  %521 = vmatprep.subr.mxu0 0.0
  %522 = vmatpush1.msra.mxu0 %v505
  %523 = vmatprep.subr.mxu0 0.0
  %524 = vmatpush1.msra.mxu0 %v504
  %525 = vmatprep.subr.mxu0 0.0
  %526 = vmatpush1.msra.mxu0 %v503
  %527 = vmatprep.subr.mxu0 0.0
  %528 = vmatpush1.msra.mxu0 %v502
  %529 = vmatprep.subr.mxu0 0.0
  %530 = vmatpush1.msra.mxu0 %v501
  %531 = vmatprep.subr.mxu0 0.0
  %532 = vmatpush1.msra.mxu0 %v500
  %533 = vmatprep.subr.mxu0 0.0
  %534 = vmatpush1.msra.mxu0 %v499
  %535 = vmatprep.subr.mxu0 0.0
  %536 = vmatpush1.msra.mxu0 %v498
  %537 = vmatprep.subr.mxu0 0.0
  %538 = vmatpush1.msra.mxu0 %v497
  %539 = vmatprep.subr.mxu0 0.0
  %540 = vmatpush1.msra.mxu0 %v496
  %541 = vmatprep.subr.mxu0 0.0
  %542 = vmatpush1.msra.mxu0 %v495
  %543 = vmatprep.subr.mxu0 0.0
  %544 = vmatpush2.msra.mxu0 0.0
  %545 = vmatprep.subr.mxu0 0.0
  %546 = vmatpush2.msra.mxu0 0.0
  %547 = vmatprep.subr.mxu0 0.0
  %548 = vmatpush2.msra.mxu0 0.0
  %549 = vmatprep.subr.mxu0 0.0
  %550 = vmatpush2.msra.mxu0 0.0
  %551 = vmatprep.subr.mxu0 0.0
  %552 = vmatpush2.msra.mxu0 0.0
  %553 = vmatprep.subr.mxu0 0.0
  %554 = vmatpush2.msra.mxu0 0.0
  %555 = vmatprep.subr.mxu0 0.0
  %556 = vmatpush2.msra.mxu0 0.0
  %557 = vmatprep.subr.mxu0 0.0
  %558 = vmatpush2.msra.mxu0 0.0
  %559 = vmatprep.subr.mxu0 0.0
  %560 = vmatpush2.msra.mxu0 0.0
  %561 = vmatprep.subr.mxu0 0.0
  %562 = vmatpush2.msra.mxu0 0.0
  %563 = vmatprep.subr.mxu0 0.0
  %564 = vmatpush2.msra.mxu0 0.0
  %565 = vmatprep.subr.mxu0 0.0
  %566 = vmatpush2.msra.mxu0 0.0
  %567 = vmatprep.subr.mxu0 0.0
  %568 = vmatpush2.msra.mxu0 0.0
  %569 = vmatprep.subr.mxu0 0.0
  %570 = vmatpush2.msra.mxu0 0.0
  %571 = vmatprep.subr.mxu0 0.0
  %572 = vmatpush2.msra.mxu0 0.0
  %573 = vmatprep.subr.mxu0 0.0
  %574 = vmatpush2.msra.mxu0 0.0
  %575 = vmatprep.mubr.f32.mxu0 0.0
  %576 = vmatmul.mubr.f32.gmra.mxu0 %v490
  %v577 = vpop.f32.mrf.mxu0
  %v578 = vadd.f32 0.0, %v577
  %v579 = vpop.f32.mrf.mxu0
  %580 = vmatprep.mubr.f32.mxu0 0.0
  %581 = vmatmul.mubr.f32.gmra.mxu0 %v491
  %v582 = vpop.f32.mrf.mxu0
  %v583 = vadd.f32 0.0, %v582
  %v584 = vpop.f32.mrf.mxu0
  %585 = vmatprep.mubr.f32.mxu0 0.0
  %586 = vmatmul.mubr.f32.gmra.mxu0 %v492
  %v587 = vpop.f32.mrf.mxu0
  %v588 = vadd.f32 0.0, %v587
  %v589 = vpop.f32.mrf.mxu0
  %590 = vmatprep.mubr.f32.mxu0 0.0
  %591 = vmatmul.mubr.f32.gmra.mxu0 %v493
  %v592 = vpop.f32.mrf.mxu0
  %v593 = vadd.f32 0.0, %v592
  %v594 = vpop.f32.mrf.mxu0
  %595 = vdwg.mxu0
  %596 = vmatprep.subr.mxu0 0.0
  %597 = vmatpush1.msra.mxu0 %v489
  %598 = vmatprep.subr.mxu0 0.0
  %599 = vmatpush1.msra.mxu0 %v488
  %600 = vmatprep.subr.mxu0 0.0
  %601 = vmatpush1.msra.mxu0 %v487
  %602 = vmatprep.subr.mxu0 0.0
  %603 = vmatpush1.msra.mxu0 %v486
  %604 = vmatprep.subr.mxu0 0.0
  %605 = vmatpush1.msra.mxu0 %v485
  %606 = vmatprep.subr.mxu0 0.0
  %607 = vmatpush1.msra.mxu0 %v484
  %608 = vmatprep.subr.mxu0 0.0
  %609 = vmatpush1.msra.mxu0 %v483
  %610 = vmatprep.subr.mxu0 0.0
  %611 = vmatpush1.msra.mxu0 %v482
  %612 = vmatprep.subr.mxu0 0.0
  %613 = vmatpush1.msra.mxu0 %v481
  %614 = vmatprep.subr.mxu0 0.0
  %615 = vmatpush1.msra.mxu0 %v480
  %616 = vmatprep.subr.mxu0 0.0
  %617 = vmatpush1.msra.mxu0 %v479
  %618 = vmatprep.subr.mxu0 0.0
  %619 = vmatpush1.msra.mxu0 %v478
  %620 = vmatprep.subr.mxu0 0.0
  %621 = vmatpush1.msra.mxu0 %v477
  %622 = vmatprep.subr.mxu0 0.0
  %623 = vmatpush1.msra.mxu0 %v476
  %624 = vmatprep.subr.mxu0 0.0
  %625 = vmatpush1.msra.mxu0 %v475
  %626 = vmatprep.subr.mxu0 0.0
  %627 = vmatpush1.msra.mxu0 %v474
  %628 = vmatprep.subr.mxu0 0.0
  %629 = vmatpush2.msra.mxu0 0.0
  %630 = vmatprep.subr.mxu0 0.0
  %631 = vmatpush2.msra.mxu0 0.0
  %632 = vmatprep.subr.mxu0 0.0
  %633 = vmatpush2.msra.mxu0 0.0
  %634 = vmatprep.subr.mxu0 0.0
  %635 = vmatpush2.msra.mxu0 0.0
  %636 = vmatprep.subr.mxu0 0.0
  %637 = vmatpush2.msra.mxu0 0.0
  %638 = vmatprep.subr.mxu0 0.0
  %639 = vmatpush2.msra.mxu0 0.0
  %640 = vmatprep.subr.mxu0 0.0
  %641 = vmatpush2.msra.mxu0 0.0
  %642 = vmatprep.subr.mxu0 0.0
  %643 = vmatpush2.msra.mxu0 0.0
  %644 = vmatprep.subr.mxu0 0.0
  %645 = vmatpush2.msra.mxu0 0.0
  %646 = vmatprep.subr.mxu0 0.0
  %647 = vmatpush2.msra.mxu0 0.0
  %648 = vmatprep.subr.mxu0 0.0
  %649 = vmatpush2.msra.mxu0 0.0
  %650 = vmatprep.subr.mxu0 0.0
  %651 = vmatpush2.msra.mxu0 0.0
  %652 = vmatprep.subr.mxu0 0.0
  %653 = vmatpush2.msra.mxu0 0.0
  %654 = vmatprep.subr.mxu0 0.0
  %655 = vmatpush2.msra.mxu0 0.0
  %656 = vmatprep.subr.mxu0 0.0
  %657 = vmatpush2.msra.mxu0 0.0
  %658 = vmatprep.subr.mxu0 0.0
  %659 = vmatpush2.msra.mxu0 0.0
  %660 = vmatprep.mubr.f32.mxu0 0.0
  %661 = vmatmul.mubr.f32.gmra.mxu0 %v470
  %v662 = vpop.f32.mrf.mxu0
  %v663 = vadd.f32 %v578, %v662
  %v664 = vpop.f32.mrf.mxu0
  %665 = vmatprep.mubr.f32.mxu0 0.0
  %666 = vmatmul.mubr.f32.gmra.mxu0 %v471
  %v667 = vpop.f32.mrf.mxu0
  %v668 = vadd.f32 %v583, %v667
  %v669 = vpop.f32.mrf.mxu0
  %670 = vmatprep.mubr.f32.mxu0 0.0
  %671 = vmatmul.mubr.f32.gmra.mxu0 %v472
  %v672 = vpop.f32.mrf.mxu0
  %v673 = vadd.f32 %v588, %v672
  %v674 = vpop.f32.mrf.mxu0
  %675 = vmatprep.mubr.f32.mxu0 0.0
  %676 = vmatmul.mubr.f32.gmra.mxu0 %v473
  %v677 = vpop.f32.mrf.mxu0
  %v678 = vadd.f32 %v593, %v677
  %v679 = vpop.f32.mrf.mxu0
  %680 = vdwg.mxu0
  %v681 = vld [vmem:[#allocation3 + $0x2] sm:$0xff]
  %v682 = vld [vmem:[#allocation3 + $0xa] sm:$0xff]
  %v683 = vld [vmem:[#allocation3 + $0x1a] sm:$0xff]
  %v684 = vld [vmem:[#allocation3 + $0x22] sm:$0xff]
  %s685 = scalar_lea.vmem %s4, 256
  %v686 = vld [vmem:[%s685] sm:$0xff]
  %v687 = vld [vmem:[%s685 + $0x8] sm:$0xff]
  %v688 = vld [vmem:[%s685 + $0x10] sm:$0xff]
  %v689 = vld [vmem:[%s685 + $0x18] sm:$0xff]
  %v690 = vld [vmem:[%s685 + $0x20] sm:$0xff]
  %v691 = vld [vmem:[%s685 + $0x28] sm:$0xff]
  %v692 = vld [vmem:[%s685 + $0x30] sm:$0xff]
  %v693 = vld [vmem:[%s685 + $0x38] sm:$0xff]
  %v694 = vld [vmem:[%s685 + $0x40] sm:$0xff]
  %v695 = vld [vmem:[%s685 + $0x48] sm:$0xff]
  %v696 = vld [vmem:[%s685 + $0x50] sm:$0xff]
  %v697 = vld [vmem:[%s685 + $0x58] sm:$0xff]
  %v698 = vld [vmem:[%s685 + $0x60] sm:$0xff]
  %v699 = vld [vmem:[%s685 + $0x68] sm:$0xff]
  %v700 = vld [vmem:[%s685 + $0x70] sm:$0xff]
  %v701 = vld [vmem:[%s685 + $0x78] sm:$0xff]
  %702 = vmatprep.subr.mxu0 0.0
  %703 = vmatpush1.msra.mxu0 %v701
  %704 = vmatprep.subr.mxu0 0.0
  %705 = vmatpush1.msra.mxu0 %v700
  %706 = vmatprep.subr.mxu0 0.0
  %707 = vmatpush1.msra.mxu0 %v699
  %708 = vmatprep.subr.mxu0 0.0
  %709 = vmatpush1.msra.mxu0 %v698
  %710 = vmatprep.subr.mxu0 0.0
  %711 = vmatpush1.msra.mxu0 %v697
  %712 = vmatprep.subr.mxu0 0.0
  %713 = vmatpush1.msra.mxu0 %v696
  %714 = vmatprep.subr.mxu0 0.0
  %715 = vmatpush1.msra.mxu0 %v695
  %716 = vmatprep.subr.mxu0 0.0
  %717 = vmatpush1.msra.mxu0 %v694
  %718 = vmatprep.subr.mxu0 0.0
  %719 = vmatpush1.msra.mxu0 %v693
  %720 = vmatprep.subr.mxu0 0.0
  %721 = vmatpush1.msra.mxu0 %v692
  %722 = vmatprep.subr.mxu0 0.0
  %723 = vmatpush1.msra.mxu0 %v691
  %724 = vmatprep.subr.mxu0 0.0
  %725 = vmatpush1.msra.mxu0 %v690
  %726 = vmatprep.subr.mxu0 0.0
  %727 = vmatpush1.msra.mxu0 %v689
  %728 = vmatprep.subr.mxu0 0.0
  %729 = vmatpush1.msra.mxu0 %v688
  %730 = vmatprep.subr.mxu0 0.0
  %731 = vmatpush1.msra.mxu0 %v687
  %732 = vmatprep.subr.mxu0 0.0
  %733 = vmatpush1.msra.mxu0 %v686
  %734 = vmatprep.subr.mxu0 0.0
  %735 = vmatpush2.msra.mxu0 0.0
  %736 = vmatprep.subr.mxu0 0.0
  %737 = vmatpush2.msra.mxu0 0.0
  %738 = vmatprep.subr.mxu0 0.0
  %739 = vmatpush2.msra.mxu0 0.0
  %740 = vmatprep.subr.mxu0 0.0
  %741 = vmatpush2.msra.mxu0 0.0
  %742 = vmatprep.subr.mxu0 0.0
  %743 = vmatpush2.msra.mxu0 0.0
  %744 = vmatprep.subr.mxu0 0.0
  %745 = vmatpush2.msra.mxu0 0.0
  %746 = vmatprep.subr.mxu0 0.0
  %747 = vmatpush2.msra.mxu0 0.0
  %748 = vmatprep.subr.mxu0 0.0
  %749 = vmatpush2.msra.mxu0 0.0
  %750 = vmatprep.subr.mxu0 0.0
  %751 = vmatpush2.msra.mxu0 0.0
  %752 = vmatprep.subr.mxu0 0.0
  %753 = vmatpush2.msra.mxu0 0.0
  %754 = vmatprep.subr.mxu0 0.0
  %755 = vmatpush2.msra.mxu0 0.0
  %756 = vmatprep.subr.mxu0 0.0
  %757 = vmatpush2.msra.mxu0 0.0
  %758 = vmatprep.subr.mxu0 0.0
  %759 = vmatpush2.msra.mxu0 0.0
  %760 = vmatprep.subr.mxu0 0.0
  %761 = vmatpush2.msra.mxu0 0.0
  %762 = vmatprep.subr.mxu0 0.0
  %763 = vmatpush2.msra.mxu0 0.0
  %764 = vmatprep.subr.mxu0 0.0
  %765 = vmatpush2.msra.mxu0 0.0
  %766 = vmatprep.mubr.f32.mxu0 0.0
  %767 = vmatmul.mubr.f32.gmra.mxu0 %v681
  %v768 = vpop.f32.mrf.mxu0
  %v769 = vadd.f32 0.0, %v768
  %v770 = vpop.f32.mrf.mxu0
  %771 = vmatprep.mubr.f32.mxu0 0.0
  %772 = vmatmul.mubr.f32.gmra.mxu0 %v682
  %v773 = vpop.f32.mrf.mxu0
  %v774 = vadd.f32 0.0, %v773
  %v775 = vpop.f32.mrf.mxu0
  %776 = vmatprep.mubr.f32.mxu0 0.0
  %777 = vmatmul.mubr.f32.gmra.mxu0 %v683
  %v778 = vpop.f32.mrf.mxu0
  %v779 = vadd.f32 0.0, %v778
  %v780 = vpop.f32.mrf.mxu0
  %781 = vmatprep.mubr.f32.mxu0 0.0
  %782 = vmatmul.mubr.f32.gmra.mxu0 %v684
  %v783 = vpop.f32.mrf.mxu0
  %v784 = vadd.f32 0.0, %v783
  %v785 = vpop.f32.mrf.mxu0
  %786 = vdwg.mxu0
  %v787 = vadd.f32 %v663, %v769
  %v788 = vadd.f32 %v668, %v774
  %v789 = vadd.f32 %v673, %v779
  %v790 = vadd.f32 %v678, %v784
  %v791 = vld [vmem:[%s5] sm:$0x1]
  %v792 = vld [vmem:[%s6] sm:$0x1]
  %v793 = vadd.f32 %v787, %v788
  %v794 = vadd.f32 %v793, %v789
  %v795 = vadd.f32 %v794, %v790
  %v796 = vrot.slane %v795, 4
  %v797 = vadd.f32 %v795, %v796
  %v798 = vrot.slane %v797, 2
  %v799 = vadd.f32 %v797, %v798
  %v800 = vrot.slane %v799, 1
  %v801 = vadd.f32 %v799, %v800
  %v802 = vmul.f32 %v787, %v787
  %v803 = vmul.f32 %v788, %v788
  %v804 = vmul.f32 %v789, %v789
  %v805 = vmul.f32 %v790, %v790
  %v806 = vadd.f32 %v802, %v803
  %v807 = vadd.f32 %v806, %v804
  %v808 = vadd.f32 %v807, %v805
  %v809 = vrot.slane %v808, 4
  %v810 = vadd.f32 %v808, %v809
  %v811 = vrot.slane %v810, 2
  %v812 = vadd.f32 %v810, %v811
  %v813 = vrot.slane %v812, 1
  %v814 = vadd.f32 %v812, %v813
  %815 = vrot.lane.b32.xlu0 %v801, 64
  %v816 = vpop.permute.xlu0 %815
  %v817 = vadd.f32 %v801, %v816
  %818 = vrot.lane.b32.xlu0 %v817, 32
  %v819 = vpop.permute.xlu0 %818
  %v820 = vadd.f32 %v817, %v819
  %821 = vrot.lane.b32.xlu0 %v820, 16
  %v822 = vpop.permute.xlu0 %821
  %v823 = vadd.f32 %v820, %v822
  %824 = vrot.lane.b32.xlu0 %v823, 8
  %v825 = vpop.permute.xlu0 %824
  %v826 = vadd.f32 %v823, %v825
  %v827 = vmul.f32 %v826, 0.001953125
  %828 = vrot.lane.b32.xlu0 %v814, 64
  %v829 = vpop.permute.xlu0 %828
  %v830 = vadd.f32 %v814, %v829
  %831 = vrot.lane.b32.xlu0 %v830, 32
  %v832 = vpop.permute.xlu0 %831
  %v833 = vadd.f32 %v830, %v832
  %834 = vrot.lane.b32.xlu0 %v833, 16
  %v835 = vpop.permute.xlu0 %834
  %v836 = vadd.f32 %v833, %v835
  %837 = vrot.lane.b32.xlu0 %v836, 8
  %v838 = vpop.permute.xlu0 %837
  %v839 = vadd.f32 %v836, %v838
  %v840 = vmul.f32 %v839, 0.001953125
  %v841 = vmul.f32 %v827, %v827
  %v842 = vsub.f32 %v840, %v841
  %v843 = vadd.f32 %v842, 1e-05
  %v844 = vrsqrt.pop %v843
  %v845 = vmul.f32 %v791, %v844
  %v846 = vmul.f32 %v827, %v845
  %v847 = vsub.f32 %v792, %v846
  %v849 = vlaneseq
  %v850 = vshrl.u32 %v849, 7
  %v851 = vsub.s32 0, %v850
  %v852 = vrot.slane %v845, %v851
  %v854 = vmul.f32 %v787, %v852
  %v855 = vmul.f32 %v788, %v852
  %v856 = vmul.f32 %v789, %v852
  %v857 = vmul.f32 %v790, %v852
  %v859 = vlaneseq
  %v860 = vshrl.u32 %v859, 7
  %v861 = vsub.s32 0, %v860
  %v862 = vrot.slane %v847, %v861
  %v864 = vadd.f32 %v854, %v862
  %v865 = vadd.f32 %v855, %v862
  %v866 = vadd.f32 %v856, %v862
  %v867 = vadd.f32 %v857, %v862
  %vm868 = vcmp.gt.f32.partialorder %v864, 0.0
  %vm869 = vcmp.gt.f32.partialorder %v865, 0.0
  %vm870 = vcmp.gt.f32.partialorder %v866, 0.0
  %vm871 = vcmp.gt.f32.partialorder %v867, 0.0
  %v872 = vmul.f32 %v864, 0.01
  %v873 = vmul.f32 %v865, 0.01
  %v874 = vmul.f32 %v866, 0.01
  %v875 = vmul.f32 %v867, 0.01
  %v876 = vsel %vm868, %v864, %v872
  %v877 = vsel %vm869, %v865, %v873
  %v878 = vsel %vm870, %v866, %v874
  %v879 = vsel %vm871, %v867, %v875
  %880 = vst [vmem:[%s7] sm:$0xff] %v876
  %881 = vst [vmem:[%s7 + $0x8] sm:$0xff] %v877
  %882 = vst [vmem:[%s7 + $0x10] sm:$0xff] %v878
  %883 = vst [vmem:[%s7 + $0x18] sm:$0xff] %v879
  // Predicated region
  $region30: #{conv_relu_forward.1} parent=0 // pred_check
    _
  $region31: #{conv_relu_forward.1} parent=0 // pred_check_branch
    %885 = sbr.rel (0) target = $region33
  $region32: #{conv_relu_forward.1} parent=0 // pred_region
    _
  $region33: #{conv_relu_forward.1} parent=0 // pred_fallthru
    _
  // Predicated region
  $region34: #{conv_relu_forward.1} parent=0 // pred_check
    _
  $region35: #{conv_relu_forward.1} parent=0 // pred_check_branch
    %887 = sbr.rel (0) target = $region37
  $region36: #{conv_relu_forward.1} parent=0 // pred_region
    _
  $region37: #{conv_relu_forward.1} parent=0 // pred_fallthru
    _

</llo_original>
